<compile_context>
chip_gen: v7x
topology: tpu7x:2x2x1
jax: 0.10.0
libtpu: 0.0.40
codegen_flags: <defaults>
</compile_context>

<pallas_src>
import functools
import math

import jax
import jax.numpy as jnp
from jax import lax
from jax.experimental import pallas as pl
from jax.experimental.pallas import tpu as pltpu

_LANE = 128


def _dense_general_kernel(x_ref, w_ref, b_ref, o_ref, *, tk):
    # grid = (batch blocks, M blocks, K blocks); axis 2 is the reduction axis.
    k = pl.program_id(2)

    # x is resident as (tb, K) for the whole (j, k) sweep of its batch block;
    # slice out the current K tile and cast to the weight compute dtype
    # (bf16) right before the MXU.  Accumulation stays f32.
    kk = pl.multiple_of(k * tk, tk)
    x_tile = x_ref[:, pl.ds(kk, tk)].astype(w_ref.dtype)

    # (tb, tk) @ (tk, tn) -> (tb, tn): plain NN-layout matmul (W was
    # pre-transposed once at init), so no in-kernel transpose is emitted.
    part = jnp.dot(x_tile, w_ref[...], preferred_element_type=jnp.float32)

    @pl.when(k == 0)
    def _():
        # Fold the bias into the first partial sum (added exactly once).
        o_ref[...] = part + b_ref[...].astype(jnp.float32)

    @pl.when(k != 0)
    def _():
        o_ref[...] += part


def _pick_tile(dim, target, granule=_LANE):
    """Largest `granule`-multiple tile <= target that divides `dim`.

    128-granular tiles are MXU/lane friendly on every generation (the v5e MXU
    is 4x128^2, so forcing 256-multiples buys nothing).  Falls back to the
    whole axis when no granule-multiple divides `dim` (the (8,128) BlockSpec
    rule then requires the full dim).
    """
    if dim <= target:
        return dim
    t = (min(target, dim) // granule) * granule
    while t >= granule:
        if dim % t == 0:
            return t
        t -= granule
    return dim


def _vmem_budget_bytes():
    """Generation-aware scoped-VMEM budget (~0.8x of physical capacity)."""
    try:
        cap = int(pltpu.get_tpu_info().vmem_capacity_bytes)
    except Exception:
        cap = 64 << 20  # conservative (v7x-sized) fallback
    return int(cap * 0.8)


def prepare_dense_general_params(weight, bias, compute_dtype=jnp.bfloat16):
    """One-time (init-time) parameter preparation -- keep OUT of the hot path.

    Returns (w_prep, b_prep, out_shape, in_shape) where
      w_prep : (K, M) in `compute_dtype` (pre-transposed, cast exactly once)
      b_prep : (1, M)
    """
    n_out = weight.ndim // 2
    out_shape = tuple(weight.shape[:n_out])
    in_shape = tuple(weight.shape[n_out:])
    M = math.prod(out_shape)
    K = math.prod(in_shape)
    w_prep = jnp.asarray(weight).reshape(M, K).T  # (K, M): contract on axis 0
    if compute_dtype is not None:
        w_prep = w_prep.astype(compute_dtype)
    b_prep = jnp.asarray(bias).reshape(1, M)
    return w_prep, b_prep, out_shape, in_shape


def dense_general_pallas(x, w_prep, b_prep, out_shape, in_shape, *,
                         tn_max=512, tk_max=2048):
    """DenseGeneral forward: y = tensordot(x, W, trailing axes) + bias.

    x      : (*batch, *in_shape)
    w_prep : (K, M) prepared weights (see prepare_dense_general_params)
    b_prep : (1, M)
    Output : (*batch, *out_shape), float32 (f32 accumulation).
    """
    out_shape = tuple(out_shape)
    in_shape = tuple(in_shape)
    n_out = len(out_shape)
    assert x.shape[x.ndim - n_out:] == in_shape, (x.shape, in_shape)
    batch_shape = x.shape[: x.ndim - n_out]

    B = math.prod(batch_shape) if batch_shape else 1
    K, M = w_prep.shape
    assert K == math.prod(in_shape) and M == math.prod(out_shape)
    assert b_prep.shape == (1, M)

    x_flat = x.reshape(B, K)

    w_isz = jnp.dtype(w_prep.dtype).itemsize
    x_isz = jnp.dtype(x_flat.dtype).itemsize
    b_isz = jnp.dtype(b_prep.dtype).itemsize

    budget = _vmem_budget_bytes()

    # Batch tile: keep x fully VMEM-resident when small; otherwise tile the
    # batch along a parallel grid axis so the x / output blocks stay bounded.
    # (Callers with large batches should also pad B to a multiple of 8.)
    tb = B
    x_budget = budget // 4
    if B * K * x_isz > x_budget and B % 8 == 0:
        tb = 8
        for cand in range(B, 7, -8):
            if B % cand == 0 and cand * K * x_isz <= x_budget:
                tb = cand
                break
    # TODO(synk): very large batches that are not a multiple of 8 still keep x
    # whole-resident (no clean 8-sublane batch tiling for them).

    # Output tile along M: 128-granular, capped at M//2 so the parallel M axis
    # has >= 2 blocks (lets v7x's two TensorCores each stream half of W).
    tn = _pick_tile(M, min(tn_max, max(M // 2, _LANE)))

    # Reduction tile along K: as wide as the VMEM budget allows (wide tk =>
    # fewer grid steps, fewer output read-modify-writes, bigger W DMAs).
    tk = _pick_tile(K, tk_max)

    def _buf_bytes(tk_):
        return (2 * tk_ * tn * w_isz        # W tile (double-buffered)
                + 2 * tb * K * x_isz        # x block
                + 2 * tb * tn * 4           # f32 output block (accumulator)
                + 2 * tn * b_isz)           # bias block

    while _buf_bytes(tk) + (4 << 20) > budget:
        new_tk = _pick_tile(K, tk // 2) if tk // 2 >= _LANE else tk
        if new_tk >= tk:
            break
        tk = new_tk

    vmem_limit = int(min(budget, max(_buf_bytes(tk) + (8 << 20), 32 << 20)))

    grid = (B // tb, M // tn, K // tk)

    out_flat = pl.pallas_call(
        functools.partial(_dense_general_kernel, tk=tk),
        out_shape=jax.ShapeDtypeStruct((B, M), jnp.float32),
        grid_spec=pltpu.PrefetchScalarGridSpec(
            num_scalar_prefetch=0,
            grid=grid,
            in_specs=[
                # x: resident per batch block; block index constant over (j, k)
                # so it is DMA'd once per batch block.
                pl.BlockSpec((tb, K), lambda b, j, k: (b, 0)),
                # W (K, M) tile in NN layout -- the bandwidth-critical stream.
                pl.BlockSpec((tk, tn), lambda b, j, k: (k, j)),
                # bias tile.
                pl.BlockSpec((1, tn), lambda b, j, k: (0, j)),
            ],
            out_specs=pl.BlockSpec((tb, tn), lambda b, j, k: (b, j)),
        ),
        compiler_params=pltpu.CompilerParams(
            dimension_semantics=("parallel", "parallel", "arbitrary"),
            vmem_limit_bytes=vmem_limit,
        ),
    )(x_flat, w_prep, b_prep)

    return out_flat.reshape(*batch_shape, *out_shape)


if __name__ == "__main__":
    # Small shapes: out_shape = (8, 32) -> M = K = 256, axes = (-2, -1), batch = 4.
    B, m1, m2 = 4, 8, 32
    out_shape = (m1, m2)

    key = jax.random.PRNGKey(0)
    kx, kw, kb = jax.random.split(key, 3)

    x = jax.random.normal(kx, (B, m1, m2), dtype=jnp.float32)

    # Deterministic lecun-normal-style init for weight (fan_in = m1*m2).
    fan_in = m1 * m2
    weight = jax.random.normal(kw, (*out_shape, *out_shape), dtype=jnp.float32)
    weight = weight * (1.0 / jnp.sqrt(jnp.float32(fan_in)))
    # The module inits bias to zeros; use a small nonzero bias here purely to
    # exercise the bias-add path in the correctness check.
    bias = 0.01 * jax.random.normal(kb, out_shape, dtype=jnp.float32)

    # One-time parameter prep (bf16 weights, pre-transposed) -- hot path only
    # ever sees the already-prepared parameters.
    w_prep, b_prep, oshape, ishape = prepare_dense_general_params(
        weight, bias, compute_dtype=jnp.bfloat16)

    y = dense_general_pallas(x, w_prep, b_prep, oshape, ishape)
    y = jax.block_until_ready(y)

    # Matched-precision reference (bf16 operands, f32 accumulation) -- tight.
    x_bf16 = x.reshape(B, fan_in).astype(jnp.bfloat16)
    y_ref_match = lax.dot_general(
        x_bf16, w_prep,
        dimension_numbers=(((1,), (0,)), ((), ())),
        preferred_element_type=jnp.float32,
    ) + b_prep
    y_ref_match = y_ref_match.reshape(B, *out_shape)

    # Full-f32 reference (original torch semantics) -- relaxed tolerance since
    # the kernel computes with bf16 weights/activations.
    y_ref_f32 = jnp.tensordot(x, weight, axes=((-2, -1), (-2, -1))) + bias

    if not jnp.allclose(y, y_ref_match, atol=1e-4, rtol=1e-4):
        raise SystemExit("mismatch vs matched-precision (bf16) reference")
    if not jnp.allclose(y, y_ref_f32, atol=5e-2, rtol=5e-2):
        raise SystemExit("mismatch vs f32 reference")

    print("KERNEL_OK")
</pallas_src>

<mosaic_0001>
module attributes {stable_mosaic.version = 11 : i64} {
  func.func @_dense_general_kernel(%arg0: i32, %arg1: i32, %arg2: i32, %arg3: memref<4x256xf32, #tpu.memory_space<vmem>>, %arg4: memref<256x128xbf16, #tpu.memory_space<vmem>>, %arg5: memref<1x128xf32, #tpu.memory_space<vmem>>, %arg6: memref<4x128xf32, #tpu.memory_space<vmem>>) attributes {dimension_semantics = [#tpu.dimension_semantics<parallel>, #tpu.dimension_semantics<parallel>, #tpu.dimension_semantics<arbitrary>], iteration_bounds = array<i64: 1, 2, 1>, scalar_prefetch = 0 : i64, scratch_operands = 0 : i64, tpu.core_type = #tpu.core_type<tc>, window_params = [{transform_indices = @transform_0, window_bounds = array<i64: 4, 256>}, {transform_indices = @transform_1, window_bounds = array<i64: 256, 128>}, {transform_indices = @transform_2, window_bounds = array<i64: 1, 128>}, {transform_indices = @transform_3, window_bounds = array<i64: 4, 128>}]} {
    %c256_i32 = arith.constant 256 : i32
    %0 = arith.muli %arg2, %c256_i32 : i32
    %1 = tpu.assume_multiple %0, 256 : i32
    %c0 = arith.constant 0 : index
    %2 = arith.index_cast %1 : i32 to index
    %3 = vector.load %arg3[%c0, %2] : memref<4x256xf32, #tpu.memory_space<vmem>>, vector<4x256xf32>
    %4 = arith.truncf %3 : vector<4x256xf32> to vector<4x256xbf16>
    %c0_0 = arith.constant 0 : index
    %c0_1 = arith.constant 0 : index
    %5 = vector.load %arg4[%c0_0, %c0_1] : memref<256x128xbf16, #tpu.memory_space<vmem>>, vector<256x128xbf16>
    %cst = arith.constant dense<0.000000e+00> : vector<4x128xf32>
    %6 = tpu.matmul %4, %5, %cst {dimension_numbers = #tpu.dot_dimension_numbers<[1], [0], [0], [1], [0, 0, 1, 1], [], []>} : vector<4x256xbf16>, vector<256x128xbf16>, vector<4x128xf32> -> vector<4x128xf32>
    %c0_i32 = arith.constant 0 : i32
    %7 = arith.cmpi eq, %arg2, %c0_i32 : i32
    %8 = arith.extui %7 : i1 to i32
    %c0_i32_2 = arith.constant 0 : i32
    %9 = arith.cmpi ne, %8, %c0_i32_2 : i32
    scf.if %9 {
      %c0_5 = arith.constant 0 : index
      %c0_6 = arith.constant 0 : index
      %13 = vector.load %arg5[%c0_5, %c0_6] : memref<1x128xf32, #tpu.memory_space<vmem>>, vector<1x128xf32>
      %14 = vector.broadcast %13 : vector<1x128xf32> to vector<4x128xf32>
      %15 = arith.addf %6, %14 : vector<4x128xf32>
      %c0_7 = arith.constant 0 : index
      %c0_8 = arith.constant 0 : index
      %16 = vector.load %arg6[%c0_7, %c0_8] : memref<4x128xf32, #tpu.memory_space<vmem>>, vector<4x128xf32>
      tpu.vector_store %arg6[%c0_7, %c0_8], %15 {strides = array<i32>} : memref<4x128xf32, #tpu.memory_space<vmem>>, vector<4x128xf32>,
    } else {
    }
    %c0_i32_3 = arith.constant 0 : i32
    %10 = arith.cmpi ne, %arg2, %c0_i32_3 : i32
    %11 = arith.extui %10 : i1 to i32
    %c0_i32_4 = arith.constant 0 : i32
    %12 = arith.cmpi ne, %11, %c0_i32_4 : i32
    scf.if %12 {
      %c0_5 = arith.constant 0 : index
      %c0_6 = arith.constant 0 : index
      %13 = vector.load %arg6[%c0_5, %c0_6] : memref<4x128xf32, #tpu.memory_space<vmem>>, vector<4x128xf32>
      %14 = arith.addf %13, %6 : vector<4x128xf32>
      %c0_7 = arith.constant 0 : index
      %c0_8 = arith.constant 0 : index
      %15 = vector.load %arg6[%c0_7, %c0_8] : memref<4x128xf32, #tpu.memory_space<vmem>>, vector<4x128xf32>
      tpu.vector_store %arg6[%c0_7, %c0_8], %14 {strides = array<i32>} : memref<4x128xf32, #tpu.memory_space<vmem>>, vector<4x128xf32>,
    } else {
    }
    return
  }
  func.func @transform_0(%arg0: i32, %arg1: i32, %arg2: i32) -> (i32, i32) {
    %c0_i32 = arith.constant 0 : i32
    %c0_i32_0 = arith.constant 0 : i32
    return %arg0, %c0_i32 : i32, i32
  }
  func.func @transform_1(%arg0: i32, %arg1: i32, %arg2: i32) -> (i32, i32) {
    %c0_i32 = arith.constant 0 : i32
    return %arg2, %arg1 : i32, i32
  }
  func.func @transform_2(%arg0: i32, %arg1: i32, %arg2: i32) -> (i32, i32) {
    %c0_i32 = arith.constant 0 : i32
    %c0_i32_0 = arith.constant 0 : i32
    return %c0_i32, %arg1 : i32, i32
  }
  func.func @transform_3(%arg0: i32, %arg1: i32, %arg2: i32) -> (i32, i32) {
    %c0_i32 = arith.constant 0 : i32
    return %arg0, %arg1 : i32, i32
  }
}

</mosaic_0001>

<llo_original>
// kernel: tpu_custom_call.1
$region0: #{tpu_custom_call.1}
  #allocation0 [shape = 'u32[]', space=smem, size = 0x4, offset = 0x4, fixed_abs, tag = 'smem constant byte address 0x4 - core index']
  #allocation1 [shape = 'u32[144,128]{1,0:T(1,128)}', space=vmem, size = 0x12000, scoped, tag = 'internal scratch']
  %s0 = inlined_call_operand.hbm [shape: f32[4,256], index: 0, kind: input, shape index: {}]
  %s1 = inlined_call_operand.hbm [shape: bf16[256,256], index: 1, kind: input, shape index: {}]
  %s2 = inlined_call_operand.vmem [shape: f32[1,256], index: 2, kind: input, shape index: {}]
  %s3 = inlined_call_operand.hbm [shape: f32[4,256], index: 3, kind: output, shape index: {}]
  %s4 = sld [smem:[#allocation0]]
  $region61: #{tpu_custom_call.1} parent=0
    _
  %s6 = ssub.s32 1, %s4
  %s7 = scalar_select 0, %s6, %s4
  $region1: #{tpu_custom_call.1} parent=0
    #allocation2 [shape = 'u8[4096]{0}', space=vmem, size = 0x1000, scoped, tag = 'input window, operand 0, single buffered']
    #allocation3 [shape = 's32[2]{0}', space=sflag, size = 0x8, scoped, tag = 'scoped memory for tpu_custom_call.1']
    #allocation4 [shape = 's32[2]{0}', space=sflag, size = 0x8, scoped, tag = 'scoped memory for tpu_custom_call.1']
    #allocation5 [shape = 'u8[131072]{0}', space=vmem, size = 0x20000, scoped, tag = 'input window, operand 1']
    #allocation6 [shape = 's32[2]{0}', space=sflag, size = 0x8, scoped, tag = 'scoped memory for tpu_custom_call.1']
    #allocation7 [shape = 'u8[4096]{0}', space=vmem, size = 0x1000, scoped, tag = 'output window, operand 0']
    %8 = vsyncpa [#allocation3], 0
    %9 = vsyncpa [#allocation6], 0
    %s10 = scalar_lea.sflag [#allocation6], 1
    %11 = vsyncpa %s10, 0
    %12 = vsyncpa [#allocation4], 0
    %s13 = scalar_lea.sflag [#allocation4], 1
    %14 = vsyncpa %s13, 0
    loop: start=0, step=1, limit=4
    $region2: #{tpu_custom_call.1} parent=1 // loop_pre_header
      _
    $region3: #{tpu_custom_call.1} parent=1 // loop_header
      %s16 = sphi 0, %s20
      %p17 = scmp.ge.s32.totalorder %s16, 4
      %s23 = sphi 0, %s42
      %s24 = sphi 0, %s38
      %s25 = sphi 0, %s34
      %s26 = sphi 0, %s23
      %s27 = sphi 0, %s24
      %s28 = sphi 0, %s25
      %s29 = sphi 0, %s26
      %s30 = sphi 0, %s27
      %s31 = sphi 0, %s28
      %s45 = sphi 0, %s47
      %s48 = sphi 0, %s45
      %s49 = sphi 0, %s48
      %s65 = sphi 0, %s49
      %s73 = sphi 0, %s75
      %s76 = sphi 0, %s73
      %s77 = sphi 0, %s76
      %s93 = sphi 0, %s77
      %s99 = sphi 0, %s101
      %s102 = sphi 0, %s99
      %s103 = sphi 0, %s102
      %s119 = sphi 0, %s103
      %s127 = sphi 0, %s129
      %s130 = sphi 0, %s127
      %s131 = sphi 0, %s130
      %s147 = sphi 0, %s131
    $region4: #{tpu_custom_call.1} parent=1 // loop_header_branch
      %19 = sbr.rel (%p17) target = $region8
    $region5: #{tpu_custom_call.1} parent=1 // loop_body
      %s21 = ssub.s32 %s16, 1
      %s22 = ssub.s32 %s16, 2
      %s32 = sadd.s32 1, %s25
      %p33 = scmp.ge.s32.totalorder %s32, 1
      %s34 = scalar_select %p33, 0, %s32
      %s35 = sadd.s32 1, %s24
      %s36 = scalar_select %p33, %s35, %s24
      %p37 = scmp.ge.s32.totalorder %s36, 2
      %s38 = scalar_select %p37, 0, %s36
      %s39 = sadd.s32 1, %s23
      %s40 = scalar_select %p37, %s39, %s23
      %p41 = scmp.ge.s32.totalorder %s40, 1
      %s42 = scalar_select %p41, 0, %s40
      %s43 = ssub.s32 %s23, %s42
      %p44 = scmp.eq.s32.totalorder %s43, 0
      %s46 = sadd.s32 %s45, 1
      %s47 = scalar_select %p44, %s45, %s46
      %p50 = pneg %p44
      %p51 = scmp.eq.s32.totalorder %s16, 1
      %p52 = por %p50, %p51
      %p53 = scmp.ne.s32.totalorder %s45, %s48
      %p54 = scmp.eq.s32.totalorder %s16, 0
      %p55 = por %p53, %p54
      %p56 = scmp.ne.s32.totalorder %s45, %s48
      %p57 = scmp.eq.s32.totalorder %s21, 1
      %p58 = por %p56, %p57
      %p59 = scmp.ne.s32.totalorder %s48, %s49
      %p60 = scmp.eq.s32.totalorder %s21, 0
      %p61 = por %p59, %p60
      %p62 = scmp.ne.s32.totalorder %s48, %s49
      %p63 = scmp.eq.s32.totalorder %s22, 1
      %p64 = por %p62, %p63
      %p66 = scmp.ne.s32.totalorder %s49, %s65
      %p67 = scmp.eq.s32.totalorder %s22, 0
      %p68 = por %p66, %p67
      %s69 = ssub.s32 %s25, %s34
      %s70 = ssub.s32 %s24, %s38
      %s71 = sor.u32 %s69, %s70
      %p72 = scmp.eq.s32.totalorder %s71, 0
      %s74 = sadd.s32 %s73, 1
      %s75 = scalar_select %p72, %s73, %s74
      %p78 = pneg %p72
      %p79 = scmp.eq.s32.totalorder %s16, 1
      %p80 = por %p78, %p79
      %p81 = scmp.ne.s32.totalorder %s73, %s76
      %p82 = scmp.eq.s32.totalorder %s16, 0
      %p83 = por %p81, %p82
      %p84 = scmp.ne.s32.totalorder %s73, %s76
      %p85 = scmp.eq.s32.totalorder %s21, 1
      %p86 = por %p84, %p85
      %p87 = scmp.ne.s32.totalorder %s76, %s77
      %p88 = scmp.eq.s32.totalorder %s21, 0
      %p89 = por %p87, %p88
      %p90 = scmp.ne.s32.totalorder %s76, %s77
      %p91 = scmp.eq.s32.totalorder %s22, 1
      %p92 = por %p90, %p91
      %p94 = scmp.ne.s32.totalorder %s77, %s93
      %p95 = scmp.eq.s32.totalorder %s22, 0
      %p96 = por %p94, %p95
      %s97 = ssub.s32 %s24, %s38
      %p98 = scmp.eq.s32.totalorder %s97, 0
      %s100 = sadd.s32 %s99, 1
      %s101 = scalar_select %p98, %s99, %s100
      %p104 = pneg %p98
      %p105 = scmp.eq.s32.totalorder %s16, 1
      %p106 = por %p104, %p105
      %p107 = scmp.ne.s32.totalorder %s99, %s102
      %p108 = scmp.eq.s32.totalorder %s16, 0
      %p109 = por %p107, %p108
      %p110 = scmp.ne.s32.totalorder %s99, %s102
      %p111 = scmp.eq.s32.totalorder %s21, 1
      %p112 = por %p110, %p111
      %p113 = scmp.ne.s32.totalorder %s102, %s103
      %p114 = scmp.eq.s32.totalorder %s21, 0
      %p115 = por %p113, %p114
      %p116 = scmp.ne.s32.totalorder %s102, %s103
      %p117 = scmp.eq.s32.totalorder %s22, 1
      %p118 = por %p116, %p117
      %p120 = scmp.ne.s32.totalorder %s103, %s119
      %p121 = scmp.eq.s32.totalorder %s22, 0
      %p122 = por %p120, %p121
      %s123 = ssub.s32 %s23, %s42
      %s124 = ssub.s32 %s24, %s38
      %s125 = sor.u32 %s123, %s124
      %p126 = scmp.eq.s32.totalorder %s125, 0
      %s128 = sadd.s32 %s127, 1
      %s129 = scalar_select %p126, %s127, %s128
      %p132 = pneg %p126
      %p133 = scmp.eq.s32.totalorder %s16, 1
      %p134 = por %p132, %p133
      %p135 = scmp.ne.s32.totalorder %s127, %s130
      %p136 = scmp.eq.s32.totalorder %s16, 0
      %p137 = por %p135, %p136
      %p138 = scmp.ne.s32.totalorder %s127, %s130
      %p139 = scmp.eq.s32.totalorder %s21, 1
      %p140 = por %p138, %p139
      %p141 = scmp.ne.s32.totalorder %s130, %s131
      %p142 = scmp.eq.s32.totalorder %s21, 0
      %p143 = por %p141, %p142
      %p144 = scmp.ne.s32.totalorder %s130, %s131
      %p145 = scmp.eq.s32.totalorder %s22, 1
      %p146 = por %p144, %p145
      %p148 = scmp.ne.s32.totalorder %s131, %s147
      %p149 = scmp.eq.s32.totalorder %s22, 0
      %p150 = por %p148, %p149
      %p151 = scmp.le.s32.totalorder 1, %s16
      %p152 = scmp.lt.s32.totalorder %s16, 3
      %p153 = pnand %p151, %p152
      %p154 = pneg %p153
      // Predicated region
      $region9: #{tpu_custom_call.1} parent=5 // pred_check
        _
      $region10: #{tpu_custom_call.1} parent=5 // pred_check_branch
        %156 = sbr.rel (%p153) target = $region12
      $region11: #{tpu_custom_call.1} parent=5 // pred_region
        %s157 = ssub.s32 %s16, 1
        // Predicated region
        $region13: #{tpu_custom_call.1} parent=11 // pred_check
          %p158 = pneg %p61
        $region14: #{tpu_custom_call.1} parent=11 // pred_check_branch
          %160 = sbr.rel (%p158) target = $region16
        $region15: #{tpu_custom_call.1} parent=11 // pred_region
          %s162 = ssub.s32 128, 128
          %163 = vsyncadd [#allocation3], %s162
          %s164 = smul.addr %s26, 2
          %s165 = smul.addr %s164, 64
          %s166 = scalar_lea.hbm %s0, %s165
          %s168 = sshll.u32 [#allocation2], 4
          %s169 = int_to_ptr.vmem [resolvable:$true] %s168
          %171 = dma.hbm_to_vmem [thread:$0]  %s166, 128, %s169, [#allocation3]
        $region16: #{tpu_custom_call.1} parent=11 // pred_fallthru
          _
      $region12: #{tpu_custom_call.1} parent=5 // pred_fallthru
        _
      %p172 = scmp.lt.s32.totalorder %s16, 2
      // Predicated region
      $region17: #{tpu_custom_call.1} parent=5 // pred_check
        %p173 = pneg %p172
      $region18: #{tpu_custom_call.1} parent=5 // pred_check_branch
        %175 = sbr.rel (%p173) target = $region20
      $region19: #{tpu_custom_call.1} parent=5 // pred_region
        // Predicated region
        $region21: #{tpu_custom_call.1} parent=19 // pred_check
          %p176 = pneg %p83
        $region22: #{tpu_custom_call.1} parent=19 // pred_check_branch
          %178 = sbr.rel (%p176) target = $region24
        $region23: #{tpu_custom_call.1} parent=19 // pred_region
          %s179 = sand.u32 %s73, 1
          %s180 = scalar_lea.sflag [#allocation6], %s179
          %s181 = sand.u32 %s73, 1
          %s182 = smul.addr %s181, 128
          %s183 = scalar_lea.vmem [#allocation5], %s182
          %s184 = smul.u32 32, %s25
          %s186 = ssub.s32 2048, 2048
          %187 = vsyncadd %s180, %s186
          %s188 = smul.addr %s184, 2
          %s189 = sadd.s32 %s24, %s188
          %s190 = smul.addr %s189, 64
          %s191 = scalar_lea.hbm %s1, %s190
          %s192 = sshll.u32 %s183, 4
          %s193 = int_to_ptr.vmem [resolvable:$true] %s192
          %198 = dma.hbm_to_vmem [thread:$0]  %s191, 2048, %s193, %s180, 128, 64, 4
        $region24: #{tpu_custom_call.1} parent=19 // pred_fallthru
          _
        // Predicated region
        $region25: #{tpu_custom_call.1} parent=19 // pred_check
          %p199 = pneg %p109
        $region26: #{tpu_custom_call.1} parent=19 // pred_check_branch
          %201 = sbr.rel (%p199) target = $region28
        $region27: #{tpu_custom_call.1} parent=19 // pred_region
          %p202 = scmp.lt.s32.totalorder %s24, 1
          %s203 = scalar_select %p202, %s24, 1
          %s204 = scalar_lea.vmem %s2, %s203
        $region28: #{tpu_custom_call.1} parent=19 // pred_fallthru
          _
      $region20: #{tpu_custom_call.1} parent=5 // pred_fallthru
        _
      %p205 = scmp.le.s32.totalorder 1, %s16
      %p206 = scmp.lt.s32.totalorder %s16, 3
      %p207 = pnand %p205, %p206
      %p208 = pneg %p207
      // Predicated region
      $region29: #{tpu_custom_call.1} parent=5 // pred_check
        _
      $region30: #{tpu_custom_call.1} parent=5 // pred_check_branch
        %210 = sbr.rel (%p207) target = $region32
      $region31: #{tpu_custom_call.1} parent=5 // pred_region
        %s211 = ssub.s32 %s16, 1
        // Predicated region
        $region33: #{tpu_custom_call.1} parent=31 // pred_check
          %p212 = pneg %p61
        $region34: #{tpu_custom_call.1} parent=31 // pred_check_branch
          %214 = sbr.rel (%p212) target = $region36
        $region35: #{tpu_custom_call.1} parent=31 // pred_region
          %215 = dma.done [#allocation3], 128
        $region36: #{tpu_custom_call.1} parent=31 // pred_fallthru
          _
        %s216 = sand.u32 %s76, 1
        %s217 = scalar_lea.sflag [#allocation6], %s216
        %s218 = sand.u32 %s76, 1
        %s219 = smul.addr %s218, 128
        %s220 = scalar_lea.vmem [#allocation5], %s219
        // Predicated region
        $region37: #{tpu_custom_call.1} parent=31 // pred_check
          %p221 = pneg %p89
        $region38: #{tpu_custom_call.1} parent=31 // pred_check_branch
          %223 = sbr.rel (%p221) target = $region40
        $region39: #{tpu_custom_call.1} parent=31 // pred_region
          %224 = dma.done %s217, 2048
        $region40: #{tpu_custom_call.1} parent=31 // pred_fallthru
          _
        %p225 = pneg %p61
        %p226 = pneg %p58
        %s227 = sand.u32 %s76, 1
        %s228 = scalar_lea.sflag [#allocation6], %s227
        %s229 = sand.u32 %s76, 1
        %s230 = smul.addr %s229, 128
        %s231 = scalar_lea.vmem [#allocation5], %s230
        %p232 = pneg %p89
        %p233 = pneg %p86
        %p234 = scmp.lt.s32.totalorder %s27, 1
        %s235 = scalar_select %p234, %s27, 1
        %s236 = scalar_lea.vmem %s2, %s235
        %p237 = pneg %p115
        %p238 = pneg %p112
        %p239 = pneg %p143
        %p240 = pneg %p140
        %s241 = sand.u32 %s130, 1
        %s242 = scalar_lea.sflag [#allocation4], %s241
        %s243 = sand.u32 %s130, 1
        %s244 = smul.addr %s243, 4
        %s245 = scalar_lea.vmem [#allocation7], %s244
        %s246 = smul.u32 32, %s28
        %p247 = scmp.lt.s32.totalorder %s27, 1
        %s248 = scalar_select %p247, %s27, 1
        %s249 = scalar_lea.vmem %s2, %s248
        %s251 = smul.u32 %s28, 256
        %s252 = sshra.s32 %s251, 7
        %s253 = sand.u32 %s251, 127
        %s254 = smul.addr %s252, 4
        %s255 = scalar_lea.vmem [#allocation2], %s254
        %v256 = vld [vmem:[%s255] sm:$0xff]
        %v258 = vcombine.high %v256, %v256
        %v260 = vpack.c.bf16 %v256, %v256
        %v261 = vpack.c.bf16 %v258, %v258
        %v262 = vld [vmem:[%s220] sm:$0xf]
        %v263 = vld [vmem:[%s220 + $0x4] sm:$0xf]
        %v264 = vld [vmem:[%s220 + $0x8] sm:$0xf]
        %v265 = vld [vmem:[%s220 + $0xc] sm:$0xf]
        %v266 = vld [vmem:[%s220 + $0x10] sm:$0xf]
        %v267 = vld [vmem:[%s220 + $0x14] sm:$0xf]
        %v268 = vld [vmem:[%s220 + $0x18] sm:$0xf]
        %v269 = vld [vmem:[%s220 + $0x1c] sm:$0xf]
        %v270 = vld [vmem:[%s220 + $0x20] sm:$0xf]
        %v271 = vld [vmem:[%s220 + $0x24] sm:$0xf]
        %v272 = vld [vmem:[%s220 + $0x28] sm:$0xf]
        %v273 = vld [vmem:[%s220 + $0x2c] sm:$0xf]
        %v274 = vld [vmem:[%s220 + $0x30] sm:$0xf]
        %v275 = vld [vmem:[%s220 + $0x34] sm:$0xf]
        %v276 = vld [vmem:[%s220 + $0x38] sm:$0xf]
        %v277 = vld [vmem:[%s220 + $0x3c] sm:$0xf]
        %v278 = vld [vmem:[%s220 + $0x40] sm:$0xf]
        %v279 = vld [vmem:[%s220 + $0x44] sm:$0xf]
        %v280 = vld [vmem:[%s220 + $0x48] sm:$0xf]
        %v281 = vld [vmem:[%s220 + $0x4c] sm:$0xf]
        %v282 = vld [vmem:[%s220 + $0x50] sm:$0xf]
        %v283 = vld [vmem:[%s220 + $0x54] sm:$0xf]
        %v284 = vld [vmem:[%s220 + $0x58] sm:$0xf]
        %v285 = vld [vmem:[%s220 + $0x5c] sm:$0xf]
        %v286 = vld [vmem:[%s220 + $0x60] sm:$0xf]
        %v287 = vld [vmem:[%s220 + $0x64] sm:$0xf]
        %v288 = vld [vmem:[%s220 + $0x68] sm:$0xf]
        %v289 = vld [vmem:[%s220 + $0x6c] sm:$0xf]
        %v290 = vld [vmem:[%s220 + $0x70] sm:$0xf]
        %v291 = vld [vmem:[%s220 + $0x74] sm:$0xf]
        %v292 = vld [vmem:[%s220 + $0x78] sm:$0xf]
        %v293 = vld [vmem:[%s220 + $0x7c] sm:$0xf]
        %v326 = vunpack.c.l.b16 %v262
        %v327 = vunpack.c.l.b16 %v263
        %v328 = vunpack.c.l.b16 %v264
        %v329 = vunpack.c.l.b16 %v265
        %v330 = vunpack.c.l.b16 %v266
        %v331 = vunpack.c.l.b16 %v267
        %v332 = vunpack.c.l.b16 %v268
        %v333 = vunpack.c.l.b16 %v269
        %v334 = vunpack.c.l.b16 %v270
        %v335 = vunpack.c.l.b16 %v271
        %v336 = vunpack.c.l.b16 %v272
        %v337 = vunpack.c.l.b16 %v273
        %v338 = vunpack.c.l.b16 %v274
        %v339 = vunpack.c.l.b16 %v275
        %v340 = vunpack.c.l.b16 %v276
        %v341 = vunpack.c.l.b16 %v277
        %v342 = vunpack.c.l.b16 %v278
        %v343 = vunpack.c.l.b16 %v279
        %v344 = vunpack.c.l.b16 %v280
        %v345 = vunpack.c.l.b16 %v281
        %v346 = vunpack.c.l.b16 %v282
        %v347 = vunpack.c.l.b16 %v283
        %v348 = vunpack.c.l.b16 %v284
        %v349 = vunpack.c.l.b16 %v285
        %v350 = vunpack.c.l.b16 %v286
        %v351 = vunpack.c.l.b16 %v287
        %v352 = vunpack.c.l.b16 %v288
        %v353 = vunpack.c.l.b16 %v289
        %v354 = vunpack.c.l.b16 %v290
        %v355 = vunpack.c.l.b16 %v291
        %v356 = vunpack.c.l.b16 %v292
        %v357 = vunpack.c.l.b16 %v293
        %v358 = vpack.c.b16 %v327, %v326
        %v359 = vpack.c.b16 %v329, %v328
        %v360 = vpack.c.b16 %v331, %v330
        %v361 = vpack.c.b16 %v333, %v332
        %v362 = vpack.c.b16 %v335, %v334
        %v363 = vpack.c.b16 %v337, %v336
        %v364 = vpack.c.b16 %v339, %v338
        %v365 = vpack.c.b16 %v341, %v340
        %v366 = vpack.c.b16 %v343, %v342
        %v367 = vpack.c.b16 %v345, %v344
        %v368 = vpack.c.b16 %v347, %v346
        %v369 = vpack.c.b16 %v349, %v348
        %v370 = vpack.c.b16 %v351, %v350
        %v371 = vpack.c.b16 %v353, %v352
        %v372 = vpack.c.b16 %v355, %v354
        %v373 = vpack.c.b16 %v357, %v356
        %390 = vmatprep.subr.bf16.mxu0 0
        %391 = vmatpush1.bf16.msra.mxu0 %v358
        %392 = vmatprep.subr.bf16.mxu0 0
        %393 = vmatpush1.bf16.msra.mxu0 %v359
        %394 = vmatprep.subr.bf16.mxu0 0
        %395 = vmatpush1.bf16.msra.mxu0 %v360
        %396 = vmatprep.subr.bf16.mxu0 0
        %397 = vmatpush1.bf16.msra.mxu0 %v361
        %398 = vmatprep.subr.bf16.mxu0 0
        %399 = vmatpush1.bf16.msra.mxu0 %v362
        %400 = vmatprep.subr.bf16.mxu0 0
        %401 = vmatpush1.bf16.msra.mxu0 %v363
        %402 = vmatprep.subr.bf16.mxu0 0
        %403 = vmatpush1.bf16.msra.mxu0 %v364
        %404 = vmatprep.subr.bf16.mxu0 0
        %405 = vmatpush1.bf16.msra.mxu0 %v365
        %406 = vmatprep.subr.bf16.mxu0 0
        %407 = vmatpush1.bf16.msra.mxu0 %v366
        %408 = vmatprep.subr.bf16.mxu0 0
        %409 = vmatpush1.bf16.msra.mxu0 %v367
        %410 = vmatprep.subr.bf16.mxu0 0
        %411 = vmatpush1.bf16.msra.mxu0 %v368
        %412 = vmatprep.subr.bf16.mxu0 0
        %413 = vmatpush1.bf16.msra.mxu0 %v369
        %414 = vmatprep.subr.bf16.mxu0 0
        %415 = vmatpush1.bf16.msra.mxu0 %v370
        %416 = vmatprep.subr.bf16.mxu0 0
        %417 = vmatpush1.bf16.msra.mxu0 %v371
        %418 = vmatprep.subr.bf16.mxu0 0
        %419 = vmatpush1.bf16.msra.mxu0 %v372
        %420 = vmatprep.subr.bf16.mxu0 0
        %421 = vmatpush1.bf16.msra.mxu0 %v373
        %422 = vmatprep.mubr.bf16.mxu0 %v261
        %423 = vmatmul.mubr.bf16.gmra.mrb[0].mxu0 %v260
        %v424 = vpop.f32.mrb[0].mxu0
        %v425 = vadd.f32 0.0, %v424
        %v426 = vpop.f32.mrb[0].mxu0
        %v427 = vpop.f32.mrb[0].mxu0
        %v428 = vpop.f32.mrb[0].mxu0
        %429 = vdwg.mxu0
        %p430 = scmp.eq.s32.totalorder %s28, 0
        // Predicated region
        $region41: #{tpu_custom_call.1} parent=31 // pred_check
          %p431 = pneg %p430
        $region42: #{tpu_custom_call.1} parent=31 // pred_check_branch
          %433 = sbr.rel (%p431) target = $region44
        $region43: #{tpu_custom_call.1} parent=31 // pred_region
          %v434 = vld [vmem:[%s249] sm:$0x1]
          %v436 = vlaneseq
          %v437 = vshrl.u32 %v436, 7
          %v438 = vsub.s32 0, %v437
          %v439 = vrot.slane %v434, %v438
          %v441 = vadd.f32 %v425, %v439
          %442 = vst [vmem:[%s245] sm:$0xf] %v441
        $region44: #{tpu_custom_call.1} parent=31 // pred_fallthru
          _
        %p443 = scmp.ne.s32.totalorder %s28, 0
        // Predicated region
        $region45: #{tpu_custom_call.1} parent=31 // pred_check
          %p444 = pneg %p443
        $region46: #{tpu_custom_call.1} parent=31 // pred_check_branch
          %446 = sbr.rel (%p444) target = $region48
        $region47: #{tpu_custom_call.1} parent=31 // pred_region
          %v447 = vld [vmem:[%s245] sm:$0xf]
          %v448 = vadd.f32 %v447, %v425
          %449 = vst [vmem:[%s245] sm:$0xf] %v448
        $region48: #{tpu_custom_call.1} parent=31 // pred_fallthru
          _
        %s450 = sand.u32 %s130, 1
        %s451 = scalar_lea.sflag [#allocation4], %s450
        %s452 = sand.u32 %s130, 1
        %s453 = smul.addr %s452, 4
        %s454 = scalar_lea.vmem [#allocation7], %s453
        // Predicated region
        $region49: #{tpu_custom_call.1} parent=31 // pred_check
          %p455 = pneg %p140
        $region50: #{tpu_custom_call.1} parent=31 // pred_check_branch
          %457 = sbr.rel (%p455) target = $region52
        $region51: #{tpu_custom_call.1} parent=31 // pred_region
          %s459 = ssub.s32 64, 64
          %460 = vsyncadd %s451, %s459
          %s461 = smul.addr %s26, 2
          %s462 = sadd.s32 %s27, %s461
          %s463 = smul.addr %s462, 64
          %s464 = scalar_lea.hbm %s3, %s463
          %s466 = sshll.u32 %s454, 4
          %s467 = int_to_ptr.vmem [resolvable:$true] %s466
          %469 = dma.vmem_to_hbm [thread:$0]  %s467, 64, %s464, %s451
        $region52: #{tpu_custom_call.1} parent=31 // pred_fallthru
          _
      $region32: #{tpu_custom_call.1} parent=5 // pred_fallthru
        _
      %p470 = scmp.le.s32.totalorder 2, %s16
      // Predicated region
      $region53: #{tpu_custom_call.1} parent=5 // pred_check
        %p471 = pneg %p470
      $region54: #{tpu_custom_call.1} parent=5 // pred_check_branch
        %473 = sbr.rel (%p471) target = $region56
      $region55: #{tpu_custom_call.1} parent=5 // pred_region
        %s474 = ssub.s32 %s16, 2
        // Predicated region
        $region57: #{tpu_custom_call.1} parent=55 // pred_check
          %p475 = pneg %p146
        $region58: #{tpu_custom_call.1} parent=55 // pred_check_branch
          %477 = sbr.rel (%p475) target = $region60
        $region59: #{tpu_custom_call.1} parent=55 // pred_region
          %s478 = sand.u32 %s131, 1
          %s479 = scalar_lea.sflag [#allocation4], %s478
          %s480 = sand.u32 %s131, 1
          %s481 = smul.addr %s480, 4
          %s482 = scalar_lea.vmem [#allocation7], %s481
          %483 = dma.done %s479, 64
        $region60: #{tpu_custom_call.1} parent=55 // pred_fallthru
          _
      $region56: #{tpu_custom_call.1} parent=5 // pred_fallthru
        _
    $region6: #{tpu_custom_call.1} parent=1 // loop_footer
      %s20 = sadd.s32 1, %s16
    $region7: #{tpu_custom_call.1} parent=1 // loop_footer_branch
      %15 = sbr.rel target = $region3
    $region8: #{tpu_custom_call.1} parent=1 // loop_exit
      _
    %484 = vsyncpa [#allocation3], 1
    %s485 = scalar_lea.sflag [#allocation3], 1
    %486 = vsyncpa %s485, 1
    %487 = vsyncpa [#allocation6], 1
    %s488 = scalar_lea.sflag [#allocation6], 1
    %489 = vsyncpa %s488, 1
    %490 = vsyncpa [#allocation4], 1
    %s491 = scalar_lea.sflag [#allocation4], 1
    %492 = vsyncpa %s491, 1

</llo_original>
